<compile_context>
chip_gen: v5e
topology: v5e:2x2
jax: 0.10.0
libtpu: 0.0.40
codegen_flags: <defaults>
</compile_context>

<pallas_src>
import functools

import jax
import jax.numpy as jnp
from jax import lax
from jax.experimental import pallas as pl
from jax.experimental.pallas import tpu as pltpu


_MXU_ROW_TILES = (1024, 512, 256, 128)   # MXU-friendly row-tile candidates


def _vmem_budget_bytes():
    """Usable VMEM budget, generation-aware with a conservative fallback."""
    phys = 64 * 1024 * 1024                       # v7x-sized conservative default
    try:
        phys = int(pltpu.get_tpu_info().vmem_capacity_bytes)
    except Exception:
        pass
    # ~25% headroom for Mosaic internal scratch / semaphores / spill slabs.
    return min(phys * 3 // 4, 96 * 1024 * 1024)


def _vmem_need(bt, tc, c, n_pad, mm_bytes, dedup):
    """Rough per-step VMEM footprint estimate (bytes)."""
    f32b = 4
    q_out = 2 * 2 * bt * tc * n_pad * f32b              # double-buffered q + out tiles (f32)
    kv = 0 if dedup else 2 * bt * c * n_pad * mm_bytes  # double-buffered resident kv slab
    tmp = bt * tc * n_pad * (f32b + mm_bytes)            # f32 attention-out temp + mm-dtype operand
    soft = 3 * bt * tc * c * f32b                         # energy / p / attn temporaries
    return q_out + kv + tmp + soft


def _attention_rows(q_mm, kv_mm):
    """q_mm: (tc, N) query rows, kv_mm: (C, N) key/value rows (matmul dtype).

    Returns f32 (tc, N) = softmax(rowmax(E) - E) @ kv with E = q @ kv^T.
    """
    # Contract the lane-dense N axis of both operands directly (A @ B^T):
    # no transpose / XLU relayout of the kv slab.
    energy = lax.dot_general(
        q_mm, kv_mm,
        dimension_numbers=(((1,), (1,)), ((), ())),
        preferred_element_type=jnp.float32)                      # (tc, C)
    # softmax is shift-invariant: softmax(rowmax(E) - E) == exp(rowmin(E) - E)
    # / rowsum(exp(rowmin(E) - E))  -> one reduction + one subtract saved, and
    # every exponent is <= 0 (no overflow).
    row_min = jnp.min(energy, axis=-1, keepdims=True)
    p = jnp.exp(row_min - energy)
    attn = p / jnp.sum(p, axis=-1, keepdims=True)                # exact normalization
    return jnp.dot(attn.astype(kv_mm.dtype), kv_mm,
                   preferred_element_type=jnp.float32)            # (tc, N)


def _cam_kernel_fused(gamma_ref, x_ref, o_ref, *, mm_dtype):
    """Row-untiled path: a single x block serves as query, key and value."""
    gamma = gamma_ref[0]
    bt = x_ref.shape[0]
    for b in range(bt):                                  # static, tiny (1 or 2)
        kv = x_ref[b].astype(mm_dtype)                   # (C, N) matmul operand
        out = _attention_rows(kv, kv)
        # Residual read straight from the ref at the add (no extra live copy).
        o_ref[b] = (gamma * out + x_ref[b]).astype(o_ref.dtype)


def _cam_kernel_tiled(gamma_ref, xq_ref, xkv_ref, o_ref, *, mm_dtype):
    """Row-tiled path: query/output rows tiled over the second grid axis; the
    key/value slab stays resident across it (optionally streamed as bf16)."""
    gamma = gamma_ref[0]
    bt = xq_ref.shape[0]
    for b in range(bt):
        kv = xkv_ref[b].astype(mm_dtype)                 # no-op when already bf16
        out = _attention_rows(xq_ref[b].astype(mm_dtype), kv)
        o_ref[b] = (gamma * out + xq_ref[b]).astype(o_ref.dtype)


def cam_module(x, gamma, *, use_bf16_matmul=False, force_row_block=None):
    """CAM_Module.forward:
        E = x_flat @ x_flat^T,  attn = softmax(rowmax(E) - E),
        out = gamma * (attn @ x_flat) + x,     x_flat = x.reshape(B, C, H*W).

    `use_bf16_matmul=True` is the recommended production setting (MXU bf16 peak,
    half the kv stream); default keeps f32 matmuls for bit-tight validation.
    """
    B, C, H, W = x.shape
    N = H * W
    n_pad = -(-N // 128) * 128                           # lane-dense last axis
    mm_dtype = jnp.bfloat16 if use_bf16_matmul else jnp.float32
    mm_bytes = jnp.dtype(mm_dtype).itemsize
    budget = _vmem_budget_bytes()

    # Zero padding of N is exact: padded columns add 0 to every inner product
    # and produce 0 output columns (sliced off below).
    x_flat = x.reshape(B, C, N).astype(jnp.float32)
    if n_pad != N:
        x_flat = jnp.pad(x_flat, ((0, 0), (0, 0), (0, n_pad - N)))

    # Batch folding: amortize the ~0.35us/step overhead for small C*N while
    # keeping >= 2 batch steps (megacore) and never over-committing VMEM
    # (on v7x-sized parts large kv slabs keep Bt at 1).
    bt = 1
    if B > 2:
        cand = -(-B // 2)
        if _vmem_need(cand, C, C, n_pad, mm_bytes, dedup=True) <= budget // 2:
            bt = cand
    b_pad = -(-B // bt) * bt
    if b_pad != B:
        x_flat = jnp.pad(x_flat, ((0, b_pad - B), (0, 0), (0, 0)))
    grid_b = b_pad // bt

    # Row (query-channel) tiling only when the single-input working set does not
    # fit; tiles are MXU-sized (multiples of 128) per the perf review.
    if force_row_block is not None:
        tc = int(force_row_block)
    elif _vmem_need(bt, C, C, n_pad, mm_bytes, dedup=True) <= budget:
        tc = C
    else:
        tc = C                                           # fallback: untiled + raised limit
        for cand in _MXU_ROW_TILES:
            if C % cand == 0 and _vmem_need(bt, cand, C, n_pad, mm_bytes, False) <= budget:
                tc = cand
                break
    tiled = tc != C
    if tiled:
        assert C % tc == 0 and tc % 8 == 0, "row block must keep (8,128) tiling"
    grid_c = C // tc

    need = _vmem_need(bt, tc, C, n_pad, mm_bytes, dedup=not tiled)
    vmem_limit = int(min(max(need * 3 // 2, 32 * 1024 * 1024), budget))

    gamma_arr = jnp.asarray(gamma, jnp.float32).reshape(1)
    out_shape = jax.ShapeDtypeStruct((b_pad, C, n_pad), x.dtype)

    if not tiled:
        out_flat = pl.pallas_call(
            functools.partial(_cam_kernel_fused, mm_dtype=mm_dtype),
            out_shape=out_shape,
            grid_spec=pltpu.PrefetchScalarGridSpec(
                num_scalar_prefetch=1,                   # gamma -> SMEM scalar
                grid=(grid_b,),
                in_specs=[pl.BlockSpec((bt, C, n_pad), lambda b, g: (b, 0, 0))],
                out_specs=pl.BlockSpec((bt, C, n_pad), lambda b, g: (b, 0, 0)),
            ),
            compiler_params=pltpu.CompilerParams(
                dimension_semantics=("parallel",),
                vmem_limit_bytes=vmem_limit,
            ),
        )(gamma_arr, x_flat)
    else:
        # Query/residual rows stream in f32; the kv slab streams in the matmul
        # dtype (bf16 halves its DMA and resident VMEM) and is resident across
        # the row-tile grid axis.
        kv_arr = x_flat.astype(mm_dtype)
        out_flat = pl.pallas_call(
            functools.partial(_cam_kernel_tiled, mm_dtype=mm_dtype),
            out_shape=out_shape,
            grid_spec=pltpu.PrefetchScalarGridSpec(
                num_scalar_prefetch=1,
                grid=(grid_b, grid_c),
                in_specs=[
                    pl.BlockSpec((bt, tc, n_pad), lambda b, r, g: (b, r, 0)),
                    # Resident kv slab.  (pl.Buffered(1) would single-buffer it
                    # on v7x; left at the default for portability.)
                    pl.BlockSpec((bt, C, n_pad), lambda b, r, g: (b, 0, 0)),
                ],
                out_specs=pl.BlockSpec((bt, tc, n_pad), lambda b, r, g: (b, r, 0)),
            ),
            compiler_params=pltpu.CompilerParams(
                # Row tiles write disjoint output blocks -> both axes parallel,
                # so v7x's second TensorCore gets work even when grid_b == 1.
                dimension_semantics=("parallel", "parallel"),
                vmem_limit_bytes=vmem_limit,
            ),
        )(gamma_arr, x_flat, kv_arr)

    return out_flat[:B, :, :N].reshape(B, C, H, W)


def cam_reference(x, gamma):
    B, C, H, W = x.shape
    xf = x.reshape(B, C, H * W).astype(jnp.float32)
    energy = jnp.einsum("bcn,bdn->bcd", xf, xf)
    energy_new = jnp.max(energy, axis=-1, keepdims=True) - energy
    attention = jax.nn.softmax(energy_new, axis=-1)
    out = jnp.einsum("bcd,bdn->bcn", attention, xf).reshape(B, C, H, W)
    return gamma * out + x


if __name__ == "__main__":
    # 1) Shape consistent with CAM_Module's usage (small): B=2, C=4, 16x16.
    x = jax.random.normal(jax.random.PRNGKey(0), (2, 4, 16, 16), dtype=jnp.float32)
    for g in (jnp.float32(0.0), jnp.float32(0.5)):   # parameter init is 0; 0.5 exercises attention
        out = jax.block_until_ready(cam_module(x, g))
        ref = cam_reference(x, g)
        assert jnp.allclose(out, ref, atol=2e-3, rtol=2e-3), float(jnp.max(jnp.abs(out - ref)))

    # 2) Odd batch and H*W not a multiple of 128: exercises N/batch padding and
    #    the batch-fold (Bt=2) path.
    x2 = jax.random.normal(jax.random.PRNGKey(0), (3, 4, 10, 10), dtype=jnp.float32)
    out2 = jax.block_until_ready(cam_module(x2, jnp.float32(0.5)))
    ref2 = cam_reference(x2, jnp.float32(0.5))
    assert jnp.allclose(out2, ref2, atol=2e-3, rtol=2e-3), float(jnp.max(jnp.abs(out2 - ref2)))
    assert bool(jnp.all(jnp.isfinite(out2)))

    # 3) Row-tiled (two-input, resident-kv) path: force a row block smaller than C.
    x3 = jax.random.normal(jax.random.PRNGKey(0), (2, 16, 16, 16), dtype=jnp.float32)
    out3 = jax.block_until_ready(cam_module(x3, jnp.float32(0.5), force_row_block=8))
    ref3 = cam_reference(x3, jnp.float32(0.5))
    assert jnp.allclose(out3, ref3, atol=2e-3, rtol=2e-3), float(jnp.max(jnp.abs(out3 - ref3)))

    # 4) bf16 MXU performance path: shape/finiteness sanity (inputs are rounded
    #    to bf16 before the exp, so no tight comparison here).
    out4 = jax.block_until_ready(cam_module(x3, jnp.float32(0.5), use_bf16_matmul=True))
    assert out4.shape == x3.shape and bool(jnp.all(jnp.isfinite(out4)))

    print("KERNEL_OK")
</pallas_src>

<mosaic_0001>
module attributes {stable_mosaic.version = 11 : i64} {
  func.func @_cam_kernel_fused(%arg0: i32, %arg1: memref<1xf32, #tpu.memory_space<smem>>, %arg2: memref<1x4x256xf32, #tpu.memory_space<vmem>>, %arg3: memref<1x4x256xf32, #tpu.memory_space<vmem>>) attributes {dimension_semantics = [#tpu.dimension_semantics<parallel>], iteration_bounds = array<i64: 2>, scalar_prefetch = 1 : i64, scratch_operands = 0 : i64, tpu.core_type = #tpu.core_type<tc>, window_params = [{transform_indices = @transform_0, window_bounds = array<i64: 1, 4, 256>}, {transform_indices = @transform_1, window_bounds = array<i64: 1, 4, 256>}]} {
    %c0 = arith.constant 0 : index
    %0 = memref.load %arg1[%c0] : memref<1xf32, #tpu.memory_space<smem>>
    %c0_0 = arith.constant 0 : index
    %c0_1 = arith.constant 0 : index
    %c0_2 = arith.constant 0 : index
    %1 = vector.load %arg2[%c0_0, %c0_1, %c0_2] : memref<1x4x256xf32, #tpu.memory_space<vmem>>, vector<1x4x256xf32>
    %2 = vector.shape_cast %1 : vector<1x4x256xf32> to vector<4x256xf32>
    %cst = arith.constant dense<0.000000e+00> : vector<4x4xf32>
    %3 = tpu.matmul %2, %2, %cst {dimension_numbers = #tpu.dot_dimension_numbers<[1], [1], [0], [0], [0, 0, 1, 0], [], []>} : vector<4x256xf32>, vector<4x256xf32>, vector<4x4xf32> -> vector<4x4xf32>
    %cst_3 = arith.constant dense<0x7F800000> : vector<4xf32>
    %4 = vector.multi_reduction <minimumf>, %3, %cst_3 [1] : vector<4x4xf32> to vector<4xf32>
    %5 = vector.shape_cast %4 : vector<4xf32> to vector<4x1xf32>
    %6 = vector.broadcast %5 : vector<4x1xf32> to vector<4x4xf32>
    %7 = arith.subf %6, %3 : vector<4x4xf32>
    %8 = math.exp %7 : vector<4x4xf32>
    %cst_4 = arith.constant dense<0.000000e+00> : vector<4xf32>
    %9 = vector.multi_reduction <add>, %8, %cst_4 [1] : vector<4x4xf32> to vector<4xf32>
    %10 = vector.shape_cast %9 : vector<4xf32> to vector<4x1xf32>
    %11 = vector.broadcast %10 : vector<4x1xf32> to vector<4x4xf32>
    %12 = arith.divf %8, %11 : vector<4x4xf32>
    %cst_5 = arith.constant dense<0.000000e+00> : vector<4x256xf32>
    %13 = tpu.matmul %12, %2, %cst_5 {dimension_numbers = #tpu.dot_dimension_numbers<[1], [0], [0], [1], [0, 0, 1, 1], [], []>} : vector<4x4xf32>, vector<4x256xf32>, vector<4x256xf32> -> vector<4x256xf32>
    %14 = vector.broadcast %0 : f32 to vector<4x256xf32>
    %15 = arith.mulf %14, %13 : vector<4x256xf32>
    %c0_6 = arith.constant 0 : index
    %c0_7 = arith.constant 0 : index
    %c0_8 = arith.constant 0 : index
    %16 = vector.load %arg2[%c0_6, %c0_7, %c0_8] : memref<1x4x256xf32, #tpu.memory_space<vmem>>, vector<1x4x256xf32>
    %17 = vector.shape_cast %16 : vector<1x4x256xf32> to vector<4x256xf32>
    %18 = arith.addf %15, %17 : vector<4x256xf32>
    %c0_9 = arith.constant 0 : index
    %c0_10 = arith.constant 0 : index
    %c0_11 = arith.constant 0 : index
    %19 = vector.load %arg3[%c0_9, %c0_10, %c0_11] : memref<1x4x256xf32, #tpu.memory_space<vmem>>, vector<1x4x256xf32>
    %20 = vector.shape_cast %19 : vector<1x4x256xf32> to vector<4x256xf32>
    %21 = vector.shape_cast %18 : vector<4x256xf32> to vector<1x4x256xf32>
    tpu.vector_store %arg3[%c0_9, %c0_10, %c0_11], %21 {strides = array<i32>} : memref<1x4x256xf32, #tpu.memory_space<vmem>>, vector<1x4x256xf32>,
    return
  }
  func.func @transform_0(%arg0: i32, %arg1: memref<1xf32, #tpu.memory_space<smem>>) -> (i32, i32, i32) {
    %c0_i32 = arith.constant 0 : i32
    %c0_i32_0 = arith.constant 0 : i32
    %c0_i32_1 = arith.constant 0 : i32
    return %arg0, %c0_i32, %c0_i32_0 : i32, i32, i32
  }
  func.func @transform_1(%arg0: i32, %arg1: memref<1xf32, #tpu.memory_space<smem>>) -> (i32, i32, i32) {
    %c0_i32 = arith.constant 0 : i32
    %c0_i32_0 = arith.constant 0 : i32
    %c0_i32_1 = arith.constant 0 : i32
    return %arg0, %c0_i32, %c0_i32_0 : i32, i32, i32
  }
}

</mosaic_0001>

<llo_original>
// kernel: tpu_custom_call.1
$region0: #{tpu_custom_call.1}
  #allocation0 [shape = 'u32[]', space=smem, size = 0x4, offset = 0x4, fixed_abs, tag = 'smem constant byte address 0x4 - core index']
  #allocation1 [shape = 'u32[72,128]{1,0:T(1,128)}', space=vmem, size = 0x9000, scoped, tag = 'internal scratch']
  #allocation2 [shape = 's32[1]{0}', space=sflag, size = 0x4, scoped, tag = 'scoped memory for tpu_custom_call.1']
  #allocation3 [shape = 'f32[1]{0:T(128)S(6)}', space=smem, size = 0x200, scoped, tag = 'prefetched SMEM operand 0']
  %s0 = inlined_call_operand.<no memory space> [shape: f32[1], index: 0, kind: input, shape index: {}]
  %s1 = inlined_call_operand.hbm [shape: f32[2,4,256], index: 1, kind: input, shape index: {}]
  %s2 = inlined_call_operand.hbm [shape: f32[2,4,256], index: 2, kind: output, shape index: {}]
  %s3 = sld [smem:[#allocation0]]
  $region41: #{tpu_custom_call.1} parent=0
    _
  %s5 = ssub.s32 1, %s3
  %s6 = scalar_select 0, %s5, %s3
  %7 = sst [smem:[#allocation3]] %s0
  $region1: #{tpu_custom_call.1} parent=0
    #allocation4 [shape = 'u8[8192]{0}', space=vmem, size = 0x2000, scoped, tag = 'input window, operand 1']
    #allocation5 [shape = 's32[2]{0}', space=sflag, size = 0x8, scoped, tag = 'scoped memory for tpu_custom_call.1']
    #allocation6 [shape = 's32[2]{0}', space=sflag, size = 0x8, scoped, tag = 'scoped memory for tpu_custom_call.1']
    #allocation7 [shape = 'u8[8192]{0}', space=vmem, size = 0x2000, scoped, tag = 'output window, operand 0']
    %8 = vsyncpa [#allocation5], 0
    %s9 = scalar_lea.sflag [#allocation5], 1
    %10 = vsyncpa %s9, 0
    %11 = vsyncpa [#allocation6], 0
    %s12 = scalar_lea.sflag [#allocation6], 1
    %13 = vsyncpa %s12, 0
    loop: start=0, step=1, limit=4
    $region2: #{tpu_custom_call.1} parent=1 // loop_pre_header
      _
    $region3: #{tpu_custom_call.1} parent=1 // loop_header
      %s15 = sphi 0, %s19
      %p16 = scmp.ge.s32.totalorder %s15, 4
      %s25 = sphi 0, %s27
      %s28 = sphi 0, %s25
      %s29 = sphi 0, %s28
      %s45 = sphi 0, %s29
      %s51 = sphi 0, %s53
      %s54 = sphi 0, %s51
      %s55 = sphi 0, %s54
      %s71 = sphi 0, %s55
    $region4: #{tpu_custom_call.1} parent=1 // loop_header_branch
      %18 = sbr.rel (%p16) target = $region8
    $region5: #{tpu_custom_call.1} parent=1 // loop_body
      %s20 = ssub.s32 %s15, 1
      %s21 = ssub.s32 %s15, 2
      %s22 = sadd.s32 %s15, 1
      %s23 = ssub.s32 %s15, %s22
      %p24 = scmp.eq.s32.totalorder %s23, 0
      %s26 = sadd.s32 %s25, 1
      %s27 = scalar_select %p24, %s25, %s26
      %p30 = pneg %p24
      %p31 = scmp.eq.s32.totalorder %s15, 1
      %p32 = por %p30, %p31
      %p33 = scmp.ne.s32.totalorder %s25, %s28
      %p34 = scmp.eq.s32.totalorder %s15, 0
      %p35 = por %p33, %p34
      %p36 = scmp.ne.s32.totalorder %s25, %s28
      %p37 = scmp.eq.s32.totalorder %s20, 1
      %p38 = por %p36, %p37
      %p39 = scmp.ne.s32.totalorder %s28, %s29
      %p40 = scmp.eq.s32.totalorder %s20, 0
      %p41 = por %p39, %p40
      %p42 = scmp.ne.s32.totalorder %s28, %s29
      %p43 = scmp.eq.s32.totalorder %s21, 1
      %p44 = por %p42, %p43
      %p46 = scmp.ne.s32.totalorder %s29, %s45
      %p47 = scmp.eq.s32.totalorder %s21, 0
      %p48 = por %p46, %p47
      %s49 = ssub.s32 %s15, %s22
      %p50 = scmp.eq.s32.totalorder %s49, 0
      %s52 = sadd.s32 %s51, 1
      %s53 = scalar_select %p50, %s51, %s52
      %p56 = pneg %p50
      %p57 = scmp.eq.s32.totalorder %s15, 1
      %p58 = por %p56, %p57
      %p59 = scmp.ne.s32.totalorder %s51, %s54
      %p60 = scmp.eq.s32.totalorder %s15, 0
      %p61 = por %p59, %p60
      %p62 = scmp.ne.s32.totalorder %s51, %s54
      %p63 = scmp.eq.s32.totalorder %s20, 1
      %p64 = por %p62, %p63
      %p65 = scmp.ne.s32.totalorder %s54, %s55
      %p66 = scmp.eq.s32.totalorder %s20, 0
      %p67 = por %p65, %p66
      %p68 = scmp.ne.s32.totalorder %s54, %s55
      %p69 = scmp.eq.s32.totalorder %s21, 1
      %p70 = por %p68, %p69
      %p72 = scmp.ne.s32.totalorder %s55, %s71
      %p73 = scmp.eq.s32.totalorder %s21, 0
      %p74 = por %p72, %p73
      %p75 = scmp.le.s32.totalorder 1, %s15
      %p76 = scmp.lt.s32.totalorder %s15, 3
      %p77 = pnand %p75, %p76
      %p78 = pneg %p77
      // Predicated region
      $region9: #{tpu_custom_call.1} parent=5 // pred_check
        _
      $region10: #{tpu_custom_call.1} parent=5 // pred_check_branch
        %80 = sbr.rel (%p77) target = $region12
      $region11: #{tpu_custom_call.1} parent=5 // pred_region
        %s81 = ssub.s32 %s15, 1
      $region12: #{tpu_custom_call.1} parent=5 // pred_fallthru
        _
      %p82 = scmp.lt.s32.totalorder %s15, 2
      // Predicated region
      $region13: #{tpu_custom_call.1} parent=5 // pred_check
        %p83 = pneg %p82
      $region14: #{tpu_custom_call.1} parent=5 // pred_check_branch
        %85 = sbr.rel (%p83) target = $region16
      $region15: #{tpu_custom_call.1} parent=5 // pred_region
        // Predicated region
        $region17: #{tpu_custom_call.1} parent=15 // pred_check
          %p86 = pneg %p35
        $region18: #{tpu_custom_call.1} parent=15 // pred_check_branch
          %88 = sbr.rel (%p86) target = $region20
        $region19: #{tpu_custom_call.1} parent=15 // pred_region
          %s89 = sand.u32 %s25, 1
          %s90 = scalar_lea.sflag [#allocation5], %s89
          %s91 = sand.u32 %s25, 1
          %s92 = smul.addr %s91, 8
          %s93 = scalar_lea.vmem [#allocation4], %s92
          %95 = vsyncadd %s90, 0
          %s96 = smul.addr %s15, 2
          %s97 = smul.addr %s96, 4
          %s98 = scalar_lea.hbm %s1, %s97
          %s100 = sshll.u32 %s98, 4
          %s101 = int_to_ptr.hbm [resolvable:$true] %s100
          %s102 = sshll.u32 %s93, 4
          %s103 = int_to_ptr.vmem [resolvable:$true] %s102
          %105 = dma.hbm_to_vmem [thread:$0]  %s101, 128, %s103, %s90
        $region20: #{tpu_custom_call.1} parent=15 // pred_fallthru
          _
      $region16: #{tpu_custom_call.1} parent=5 // pred_fallthru
        _
      %p106 = scmp.le.s32.totalorder 1, %s15
      %p107 = scmp.lt.s32.totalorder %s15, 3
      %p108 = pnand %p106, %p107
      %p109 = pneg %p108
      // Predicated region
      $region21: #{tpu_custom_call.1} parent=5 // pred_check
        _
      $region22: #{tpu_custom_call.1} parent=5 // pred_check_branch
        %111 = sbr.rel (%p108) target = $region24
      $region23: #{tpu_custom_call.1} parent=5 // pred_region
        %s112 = ssub.s32 %s15, 1
        %s113 = sand.u32 %s28, 1
        %s114 = scalar_lea.sflag [#allocation5], %s113
        %s115 = sand.u32 %s28, 1
        %s116 = smul.addr %s115, 8
        %s117 = scalar_lea.vmem [#allocation4], %s116
        // Predicated region
        $region25: #{tpu_custom_call.1} parent=23 // pred_check
          %p118 = pneg %p41
        $region26: #{tpu_custom_call.1} parent=23 // pred_check_branch
          %120 = sbr.rel (%p118) target = $region28
        $region27: #{tpu_custom_call.1} parent=23 // pred_region
          %122 = dma.done %s114, 128
        $region28: #{tpu_custom_call.1} parent=23 // pred_fallthru
          _
        %s123 = sand.u32 %s28, 1
        %s124 = scalar_lea.sflag [#allocation5], %s123
        %s125 = sand.u32 %s28, 1
        %s126 = smul.addr %s125, 8
        %s127 = scalar_lea.vmem [#allocation4], %s126
        %p128 = pneg %p41
        %p129 = pneg %p38
        %p130 = pneg %p67
        %p131 = pneg %p64
        %s132 = sand.u32 %s54, 1
        %s133 = scalar_lea.sflag [#allocation6], %s132
        %s134 = sand.u32 %s54, 1
        %s135 = smul.addr %s134, 8
        %s136 = scalar_lea.vmem [#allocation7], %s135
        %s137 = sld [smem:[#allocation3]]
        %v138 = vld [vmem:[%s117] sm:$0xff]
        %140 = vst [vmem:[#allocation1] ss:$2 sm:$0xff] %v138
        %v141 = vld.sshfl [vmem:[#allocation1] sm:$0xff pattern:$0x75316420]
        %v142 = vld.sshfl [vmem:[#allocation1 + $0x8] sm:$0xff pattern:$0x75316420]
        %145 = vst [vmem:[#allocation1] ss:$2 sm:$0xff] %v138
        %v146 = vld.sshfl [vmem:[#allocation1] sm:$0xff pattern:$0x75316420]
        %v147 = vld.sshfl [vmem:[#allocation1 + $0x8] sm:$0xff pattern:$0x75316420]
        %150 = vmatpush.xpose.msra.mxu0 0.0
        %151 = vmatpush.xpose.msra.mxu0 0.0
        %152 = vmatpush.xpose.msra.mxu0 0.0
        %153 = vmatpush.xpose.msra.mxu0 0.0
        %154 = vmatpush.xpose.msra.mxu0 0.0
        %155 = vmatpush.xpose.msra.mxu0 0.0
        %156 = vmatpush.xpose.msra.mxu0 0.0
        %157 = vmatpush.xpose.msra.mxu0 0.0
        %158 = vmatpush.xpose.msra.mxu0 0.0
        %159 = vmatpush.xpose.msra.mxu0 0.0
        %160 = vmatpush.xpose.msra.mxu0 0.0
        %161 = vmatpush.xpose.msra.mxu0 0.0
        %162 = vmatpush.xpose.msra.mxu0 0.0
        %163 = vmatpush.xpose.msra.mxu0 0.0
        %164 = vmatpush.xpose.msra.mxu0 0.0
        %165 = vmatpush.xpose.msra.mxu0 %v146
        %166 = vmatmul.f32.gmra.mxu0 %v141
        %v167 = vpop.f32.mrf.mxu0
        %v168 = vadd.f32 0.0, %v167
        %169 = vdwg.mxu0
        %170 = vmatpush.xpose.msra.mxu0 0.0
        %171 = vmatpush.xpose.msra.mxu0 0.0
        %172 = vmatpush.xpose.msra.mxu0 0.0
        %173 = vmatpush.xpose.msra.mxu0 0.0
        %174 = vmatpush.xpose.msra.mxu0 0.0
        %175 = vmatpush.xpose.msra.mxu0 0.0
        %176 = vmatpush.xpose.msra.mxu0 0.0
        %177 = vmatpush.xpose.msra.mxu0 0.0
        %178 = vmatpush.xpose.msra.mxu0 0.0
        %179 = vmatpush.xpose.msra.mxu0 0.0
        %180 = vmatpush.xpose.msra.mxu0 0.0
        %181 = vmatpush.xpose.msra.mxu0 0.0
        %182 = vmatpush.xpose.msra.mxu0 0.0
        %183 = vmatpush.xpose.msra.mxu0 0.0
        %184 = vmatpush.xpose.msra.mxu0 0.0
        %185 = vmatpush.xpose.msra.mxu0 %v147
        %186 = vmatmul.f32.gmra.mxu0 %v142
        %v187 = vpop.f32.mrf.mxu0
        %v188 = vadd.f32 %v168, %v187
        %189 = vdwg.mxu0
        %vm190 = vcmask 27648
        %v191 = vsel %vm190, %v188, inf
        %192 = vmin.xlane.f32.xlu0 %v191
        %v193 = vpop.xlane.xlu0 %192
        %v194 = vsub.f32 %v193, %v188
        %v195 = vmul.f32 %v194, 1.442695
        %v196 = vpow.pop %v195
        %v197 = vsel %vm190, %v196, 0.0
        %198 = vadd.xlane.f32.xlu0 %v197
        %v199 = vpop.xlane.xlu0 %198
        %v200 = vrcp.pop %v199
        %v201 = vmul.f32 %v199, %v200
        %v202 = vsub.f32 1.0, %v201
        %v203 = vmul.f32 %v200, %v202
        %v204 = vadd.f32 %v200, %v203
        %vm205 = vweird.f32 %v199
        %vm206 = vweird.f32 %v200
        %vm207 = vmor %vm205, %vm206
        %v208 = vsel %vm207, %v200, %v204
        %v209 = vand.u32 2147483647, %v199
        %vm210 = vcmp.eq.f32.partialorder %v209, 8.507059e+37
        %v211 = vand.u32 %v199, 2147483648
        %v212 = vor.u32 1.1754944e-38, %v211
        %v213 = vsel %vm210, %v212, %v208
        %v214 = vmul.f32 %v196, %v213
        %215 = vst [vmem:[#allocation1] ss:$2 sm:$0xff] %v138
        %v216 = vld.sshfl [vmem:[#allocation1] sm:$0xff pattern:$0x75316420]
        %v217 = vld.sshfl [vmem:[#allocation1 + $0x8] sm:$0xff pattern:$0x75316420]
        %vm218 = vcmask 31744
        %v220 = vsel %vm218, %v214, 0
        %vm222 = vcmask 1043456
        %v223 = vsel %vm222, %v216, 0
        %v225 = vsel %vm222, %v217, 0
        %227 = vmatpush.msra.mxu0 0.0
        %228 = vmatpush.msra.mxu0 0.0
        %229 = vmatpush.msra.mxu0 0.0
        %230 = vmatpush.msra.mxu0 0.0
        %231 = vmatpush.msra.mxu0 0.0
        %232 = vmatpush.msra.mxu0 0.0
        %233 = vmatpush.msra.mxu0 0.0
        %234 = vmatpush.msra.mxu0 0.0
        %235 = vmatpush.msra.mxu0 0.0
        %236 = vmatpush.msra.mxu0 0.0
        %237 = vmatpush.msra.mxu0 0.0
        %238 = vmatpush.msra.mxu0 0.0
        %239 = vmatpush.msra.mxu0 0.0
        %240 = vmatpush.msra.mxu0 0.0
        %241 = vmatpush.msra.mxu0 0.0
        %242 = vmatpush.msra.mxu0 %v223
        %243 = vmatmul.f32.gmra.mxu0 %v220
        %v244 = vpop.f32.mrf.mxu0
        %v245 = vadd.f32 0.0, %v244
        %246 = vdwg.mxu0
        %247 = vmatpush.msra.mxu0 0.0
        %248 = vmatpush.msra.mxu0 0.0
        %249 = vmatpush.msra.mxu0 0.0
        %250 = vmatpush.msra.mxu0 0.0
        %251 = vmatpush.msra.mxu0 0.0
        %252 = vmatpush.msra.mxu0 0.0
        %253 = vmatpush.msra.mxu0 0.0
        %254 = vmatpush.msra.mxu0 0.0
        %255 = vmatpush.msra.mxu0 0.0
        %256 = vmatpush.msra.mxu0 0.0
        %257 = vmatpush.msra.mxu0 0.0
        %258 = vmatpush.msra.mxu0 0.0
        %259 = vmatpush.msra.mxu0 0.0
        %260 = vmatpush.msra.mxu0 0.0
        %261 = vmatpush.msra.mxu0 0.0
        %262 = vmatpush.msra.mxu0 %v225
        %263 = vmatmul.f32.gmra.mxu0 %v220
        %v264 = vpop.f32.mrf.mxu0
        %v265 = vadd.f32 0.0, %v264
        %266 = vdwg.mxu0
        %v267 = vstv %s137
        %v268 = vmul.f32 %v267, %v245
        %v269 = vmul.f32 %v267, %v265
        %270 = vst [vmem:[#allocation1] ss:$2 sm:$0xff] %v138
        %v271 = vld.sshfl [vmem:[#allocation1] sm:$0xff pattern:$0x75316420]
        %v272 = vld.sshfl [vmem:[#allocation1 + $0x8] sm:$0xff pattern:$0x75316420]
        %v275 = vadd.f32 %v268, %v271
        %v276 = vadd.f32 %v269, %v272
        %v279 = vrot.slane %v276, 4
        %v280 = vsel %vm222, %v275, %v279
        %282 = vst [vmem:[%s136] sm:$0xff] %v280
        %s283 = sand.u32 %s54, 1
        %s284 = scalar_lea.sflag [#allocation6], %s283
        %s285 = sand.u32 %s54, 1
        %s286 = smul.addr %s285, 8
        %s287 = scalar_lea.vmem [#allocation7], %s286
        // Predicated region
        $region29: #{tpu_custom_call.1} parent=23 // pred_check
          %p288 = pneg %p64
        $region30: #{tpu_custom_call.1} parent=23 // pred_check_branch
          %290 = sbr.rel (%p288) target = $region32
        $region31: #{tpu_custom_call.1} parent=23 // pred_region
          %292 = vsyncadd %s284, 0
          %s293 = smul.addr %s20, 2
          %s294 = smul.addr %s293, 4
          %s295 = scalar_lea.hbm %s2, %s294
          %s297 = sshll.u32 %s287, 4
          %s298 = int_to_ptr.vmem [resolvable:$true] %s297
          %s299 = sshll.u32 %s295, 4
          %s300 = int_to_ptr.hbm [resolvable:$true] %s299
          %302 = dma.vmem_to_hbm [thread:$0]  %s298, 128, %s300, %s284
        $region32: #{tpu_custom_call.1} parent=23 // pred_fallthru
          _
      $region24: #{tpu_custom_call.1} parent=5 // pred_fallthru
        _
      %p303 = scmp.le.s32.totalorder 2, %s15
      // Predicated region
      $region33: #{tpu_custom_call.1} parent=5 // pred_check
        %p304 = pneg %p303
      $region34: #{tpu_custom_call.1} parent=5 // pred_check_branch
        %306 = sbr.rel (%p304) target = $region36
      $region35: #{tpu_custom_call.1} parent=5 // pred_region
        %s307 = ssub.s32 %s15, 2
        // Predicated region
        $region37: #{tpu_custom_call.1} parent=35 // pred_check
          %p308 = pneg %p70
        $region38: #{tpu_custom_call.1} parent=35 // pred_check_branch
          %310 = sbr.rel (%p308) target = $region40
        $region39: #{tpu_custom_call.1} parent=35 // pred_region
          %s311 = sand.u32 %s55, 1
          %s312 = scalar_lea.sflag [#allocation6], %s311
          %s313 = sand.u32 %s55, 1
          %s314 = smul.addr %s313, 8
          %s315 = scalar_lea.vmem [#allocation7], %s314
          %317 = dma.done %s312, 128
        $region40: #{tpu_custom_call.1} parent=35 // pred_fallthru
          _
      $region36: #{tpu_custom_call.1} parent=5 // pred_fallthru
        _
    $region6: #{tpu_custom_call.1} parent=1 // loop_footer
      %s19 = sadd.s32 1, %s15
    $region7: #{tpu_custom_call.1} parent=1 // loop_footer_branch
      %14 = sbr.rel target = $region3
    $region8: #{tpu_custom_call.1} parent=1 // loop_exit
      _
    %318 = vsyncpa [#allocation5], 1
    %s319 = scalar_lea.sflag [#allocation5], 1
    %320 = vsyncpa %s319, 1
    %321 = vsyncpa [#allocation6], 1
    %s322 = scalar_lea.sflag [#allocation6], 1
    %323 = vsyncpa %s322, 1

</llo_original>
